<compile_context>
chip_gen: v5e
topology: v5e:2x2
jax: 0.10.0
libtpu: 0.0.40
codegen_flags: <defaults>
</compile_context>

<pallas_src>
import functools

import jax
import jax.numpy as jnp
from jax.experimental import pallas as pl
from jax.experimental.pallas import tpu as pltpu

LANES = 128
MAX_TILE_ROWS = 1024   # (1024, 128) f32 tile = 512 KiB; 2 inputs x 2 buffers = 2 MiB VMEM
NCORES = 2             # leading "parallel" grid axis (2 TCs on v7x, plain loop elsewhere)


def _masked_bce_kernel(x_ref, t_ref, sum_ref, cnt_ref, *,
                       n_valid_elems, steps_per_core, tile_rows):
    c = pl.program_id(0)   # "core" slice (parallel axis)
    j = pl.program_id(1)   # reduction step within this slice (arbitrary axis)

    @pl.when(j == 0)
    def _():
        sum_ref[...] = jnp.zeros_like(sum_ref)
        cnt_ref[...] = jnp.zeros_like(cnt_ref)

    # Cast after the VMEM load (cheap on the VPU); original dtype streamed from HBM.
    x = x_ref[...].astype(jnp.float32)
    t = t_ref[...].astype(jnp.float32)

    # Global element index of every lane of this tile, derived from the
    # *unclamped* grid position, so the partial last tile, the lane-pad tail
    # and any clamped (duplicate) tiles all mask to zero.
    row = jax.lax.broadcasted_iota(jnp.int32, (tile_rows, LANES), 0)
    lane = jax.lax.broadcasted_iota(jnp.int32, (tile_rows, LANES), 1)
    step = c * steps_per_core + j
    global_idx = (step * tile_rows + row) * LANES + lane
    valid = jnp.logical_and(global_idx < n_valid_elems, t >= 0.0)

    # PyTorch nn.BCELoss clamps the log terms at -100.
    log_p = jnp.maximum(jnp.log(x), -100.0)
    log_1mp = jnp.maximum(jnp.log(1.0 - x), -100.0)
    loss = -(t * log_p + (1.0 - t) * log_1mp)
    loss = jnp.where(valid, loss, 0.0)          # also squashes NaNs from garbage lanes
    cnt = valid.astype(jnp.float32)

    # Per-(sublane, lane) partial accumulation: pure vreg-wise VPU adds into the
    # lane-dense (8, 128) resident output blocks.  The cross-lane/sublane
    # reduction is deferred to the wrapper epilogue.
    sum_ref[...] += loss.reshape(tile_rows // 8, 8, LANES).sum(axis=0)
    cnt_ref[...] += cnt.reshape(tile_rows // 8, 8, LANES).sum(axis=0)


def masked_bce_loss(inputs, targets):
    """Pallas implementation of MaskedBCELoss.forward."""
    x = inputs.reshape(-1)
    t = targets.reshape(-1)
    n = x.shape[0]
    if n == 0:
        return jnp.float32(0.0)

    # Pad only to a lane multiple (<= 127 elements) so the 1-D data can be
    # viewed as (rows, 128).  When n is already lane-aligned this is a
    # zero-copy reshape; pad values are irrelevant (masked in-kernel).
    rem = n % LANES
    if rem:
        x = jnp.pad(x, (0, LANES - rem))
        t = jnp.pad(t, (0, LANES - rem))
    rows = x.shape[0] // LANES
    x2 = x.reshape(rows, LANES)
    t2 = t.reshape(rows, LANES)

    # Biggest useful tile height (multiple of 8, capped at MAX_TILE_ROWS).
    tile_rows = min(MAX_TILE_ROWS, ((rows + 7) // 8) * 8)
    n_row_blocks = (rows + tile_rows - 1) // tile_rows
    ncores = min(NCORES, n_row_blocks)
    steps_per_core = (n_row_blocks + ncores - 1) // ncores
    last_block = n_row_blocks - 1

    def in_index(c, j):
        # Clamp so the DMA never starts past the end of the array; clamped
        # (duplicate) tiles contribute nothing thanks to the in-kernel
        # global-index mask.
        return (jnp.minimum(c * steps_per_core + j, last_block), 0)

    kernel = functools.partial(_masked_bce_kernel,
                               n_valid_elems=n,
                               steps_per_core=steps_per_core,
                               tile_rows=tile_rows)

    sum_out, cnt_out = pl.pallas_call(
        kernel,
        out_shape=(jax.ShapeDtypeStruct((ncores * 8, LANES), jnp.float32),
                   jax.ShapeDtypeStruct((ncores * 8, LANES), jnp.float32)),
        grid_spec=pltpu.PrefetchScalarGridSpec(
            num_scalar_prefetch=0,
            grid=(ncores, steps_per_core),
            in_specs=[pl.BlockSpec((tile_rows, LANES), in_index),
                      pl.BlockSpec((tile_rows, LANES), in_index)],
            out_specs=[pl.BlockSpec((8, LANES), lambda c, j: (c, 0)),
                       pl.BlockSpec((8, LANES), lambda c, j: (c, 0))],
        ),
        compiler_params=pltpu.CompilerParams(
            dimension_semantics=("parallel", "arbitrary")),
    )(x2, t2)

    total = jnp.sum(sum_out)
    count = jnp.sum(cnt_out)
    # "if valid_mask.sum() == 0: return 0.0"
    return jnp.where(count > 0.0, total / jnp.maximum(count, 1.0),
                     jnp.float32(0.0))


def _reference(inputs, targets):
    """Plain-JAX reference mirroring the PyTorch module."""
    x = inputs.reshape(-1).astype(jnp.float32)
    t = targets.reshape(-1).astype(jnp.float32)
    valid = t >= 0.0
    log_p = jnp.maximum(jnp.log(x), -100.0)
    log_1mp = jnp.maximum(jnp.log(1.0 - x), -100.0)
    loss = -(t * log_p + (1.0 - t) * log_1mp)
    cnt = jnp.sum(valid.astype(jnp.float32))
    s = jnp.sum(jnp.where(valid, loss, 0.0))
    return jnp.where(cnt > 0.0, s / jnp.maximum(cnt, 1.0), jnp.float32(0.0))


if __name__ == "__main__":
    key = jax.random.PRNGKey(0)
    k1, k2, k3, k4, k5, k6 = jax.random.split(key, 6)

    # Case 1: module-consistent small shapes — a (batch, 1) column of
    # probabilities (classifier head output) and a (batch,) target vector with
    # 0/1 labels plus -1 "missing label" entries.  batch=300 also exercises the
    # n % 128 != 0 (lane-pad) path and the adaptive small-tile path.
    batch = 300
    probs = jax.nn.sigmoid(jax.random.normal(k1, (batch, 1), dtype=jnp.float32))
    labels = jax.random.bernoulli(k2, 0.5, (batch,)).astype(jnp.float32)
    missing = jax.random.bernoulli(k3, 0.3, (batch,))
    targets = jnp.where(missing, jnp.float32(-1.0), labels)

    out = jax.block_until_ready(masked_bce_loss(probs, targets))
    ref = _reference(probs, targets)
    assert jnp.allclose(out, ref, rtol=1e-5, atol=1e-6), (out, ref)

    # Case 2: all targets invalid -> 0.0.
    out_empty = jax.block_until_ready(
        masked_bce_loss(probs, jnp.full((batch,), -1.0, jnp.float32)))
    assert jnp.allclose(out_empty, 0.0), out_empty

    # Case 3: a few grid steps (still modest) to exercise multi-tile
    # accumulation, the two-"core" split, a partial last tile and
    # clamped-tile masking.  (1024, 300) -> 307200 elems -> 2400 rows
    # -> 3 row-blocks over 2 "cores" x 2 steps.
    b2, d2 = 1024, 300
    probs2 = jax.nn.sigmoid(jax.random.normal(k4, (b2, d2), dtype=jnp.float32))
    labels2 = jax.random.bernoulli(k5, 0.5, (b2, d2)).astype(jnp.float32)
    missing2 = jax.random.bernoulli(k6, 0.2, (b2, d2))
    targets2 = jnp.where(missing2, jnp.float32(-1.0), labels2)

    out2 = jax.block_until_ready(masked_bce_loss(probs2, targets2))
    ref2 = _reference(probs2, targets2)
    assert jnp.allclose(out2, ref2, rtol=1e-4, atol=1e-5), (out2, ref2)

    print("KERNEL_OK")
</pallas_src>

<mosaic_0001>
module attributes {stable_mosaic.version = 11 : i64} {
  func.func @_masked_bce_kernel(%arg0: i32, %arg1: i32, %arg2: memref<8x128xf32, #tpu.memory_space<vmem>>, %arg3: memref<8x128xf32, #tpu.memory_space<vmem>>, %arg4: memref<8x128xf32, #tpu.memory_space<vmem>>, %arg5: memref<8x128xf32, #tpu.memory_space<vmem>>) attributes {dimension_semantics = [#tpu.dimension_semantics<parallel>, #tpu.dimension_semantics<arbitrary>], iteration_bounds = array<i64: 1, 1>, scalar_prefetch = 0 : i64, scratch_operands = 0 : i64, tpu.core_type = #tpu.core_type<tc>, window_params = [{transform_indices = @transform_0, window_bounds = array<i64: 8, 128>}, {transform_indices = @transform_1, window_bounds = array<i64: 8, 128>}, {transform_indices = @transform_2, window_bounds = array<i64: 8, 128>}, {transform_indices = @transform_3, window_bounds = array<i64: 8, 128>}]} {
    %c0_i32 = arith.constant 0 : i32
    %0 = arith.cmpi eq, %arg1, %c0_i32 : i32
    %1 = arith.extui %0 : i1 to i32
    %c0_i32_0 = arith.constant 0 : i32
    %2 = arith.cmpi ne, %1, %c0_i32_0 : i32
    scf.if %2 {
      %cst_20 = arith.constant 0.000000e+00 : f32
      %49 = vector.broadcast %cst_20 : f32 to vector<8x128xf32>
      %c0_21 = arith.constant 0 : index
      %c0_22 = arith.constant 0 : index
      %50 = vector.load %arg4[%c0_21, %c0_22] : memref<8x128xf32, #tpu.memory_space<vmem>>, vector<8x128xf32>
      tpu.vector_store %arg4[%c0_21, %c0_22], %49 {strides = array<i32>} : memref<8x128xf32, #tpu.memory_space<vmem>>, vector<8x128xf32>,
      %cst_23 = arith.constant 0.000000e+00 : f32
      %51 = vector.broadcast %cst_23 : f32 to vector<8x128xf32>
      %c0_24 = arith.constant 0 : index
      %c0_25 = arith.constant 0 : index
      %52 = vector.load %arg5[%c0_24, %c0_25] : memref<8x128xf32, #tpu.memory_space<vmem>>, vector<8x128xf32>
      tpu.vector_store %arg5[%c0_24, %c0_25], %51 {strides = array<i32>} : memref<8x128xf32, #tpu.memory_space<vmem>>, vector<8x128xf32>,
    } else {
    }
    %c0 = arith.constant 0 : index
    %c0_1 = arith.constant 0 : index
    %3 = vector.load %arg2[%c0, %c0_1] : memref<8x128xf32, #tpu.memory_space<vmem>>, vector<8x128xf32>
    %c0_2 = arith.constant 0 : index
    %c0_3 = arith.constant 0 : index
    %4 = vector.load %arg3[%c0_2, %c0_3] : memref<8x128xf32, #tpu.memory_space<vmem>>, vector<8x128xf32>
    %5 = tpu.iota {dimensions = array<i32: 0>} : vector<8x128xi32>
    %6 = tpu.iota {dimensions = array<i32: 1>} : vector<8x128xi32>
    %c1_i32 = arith.constant 1 : i32
    %7 = arith.muli %arg0, %c1_i32 : i32
    %8 = arith.addi %7, %arg1 : i32
    %c8_i32 = arith.constant 8 : i32
    %9 = arith.muli %8, %c8_i32 : i32
    %10 = vector.broadcast %9 : i32 to vector<8x128xi32>
    %11 = arith.addi %10, %5 : vector<8x128xi32>
    %c128_i32 = arith.constant 128 : i32
    %12 = vector.broadcast %c128_i32 : i32 to vector<8x128xi32>
    %13 = arith.muli %11, %12 : vector<8x128xi32>
    %14 = arith.addi %13, %6 : vector<8x128xi32>
    %c300_i32 = arith.constant 300 : i32
    %15 = vector.broadcast %c300_i32 : i32 to vector<8x128xi32>
    %16 = arith.cmpi slt, %14, %15 : vector<8x128xi32>
    %cst = arith.constant 0.000000e+00 : f32
    %17 = vector.broadcast %cst : f32 to vector<8x128xf32>
    %18 = arith.cmpf oge, %4, %17 : vector<8x128xf32>
    %19 = arith.andi %16, %18 : vector<8x128xi1>
    %20 = math.log %3 : vector<8x128xf32>
    %cst_4 = arith.constant -1.000000e+02 : f32
    %21 = vector.broadcast %cst_4 : f32 to vector<8x128xf32>
    %22 = arith.maximumf %20, %21 : vector<8x128xf32>
    %cst_5 = arith.constant 1.000000e+00 : f32
    %23 = vector.broadcast %cst_5 : f32 to vector<8x128xf32>
    %24 = arith.subf %23, %3 : vector<8x128xf32>
    %25 = math.log %24 : vector<8x128xf32>
    %cst_6 = arith.constant -1.000000e+02 : f32
    %26 = vector.broadcast %cst_6 : f32 to vector<8x128xf32>
    %27 = arith.maximumf %25, %26 : vector<8x128xf32>
    %28 = arith.mulf %4, %22 : vector<8x128xf32>
    %cst_7 = arith.constant 1.000000e+00 : f32
    %29 = vector.broadcast %cst_7 : f32 to vector<8x128xf32>
    %30 = arith.subf %29, %4 : vector<8x128xf32>
    %31 = arith.mulf %30, %27 : vector<8x128xf32>
    %32 = arith.addf %28, %31 : vector<8x128xf32>
    %cst_8 = arith.constant 0.000000e+00 : f32
    %33 = vector.broadcast %cst_8 : f32 to vector<8x128xf32>
    %34 = arith.subf %33, %32 : vector<8x128xf32>
    %cst_9 = arith.constant 0.000000e+00 : f32
    %35 = vector.broadcast %cst_9 : f32 to vector<8x128xf32>
    %36 = arith.select %19, %34, %35 : vector<8x128xi1>, vector<8x128xf32>
    %37 = arith.extui %19 : vector<8x128xi1> to vector<8x128xi32>
    %38 = arith.sitofp %37 : vector<8x128xi32> to vector<8x128xf32>
    %c0_10 = arith.constant 0 : index
    %c0_11 = arith.constant 0 : index
    %39 = vector.load %arg4[%c0_10, %c0_11] : memref<8x128xf32, #tpu.memory_space<vmem>>, vector<8x128xf32>
    %40 = vector.shape_cast %36 : vector<8x128xf32> to vector<1x8x128xf32>
    %cst_12 = arith.constant dense<0.000000e+00> : vector<8x128xf32>
    %41 = vector.multi_reduction <add>, %40, %cst_12 [0] : vector<1x8x128xf32> to vector<8x128xf32>
    %42 = arith.addf %39, %41 : vector<8x128xf32>
    %c0_13 = arith.constant 0 : index
    %c0_14 = arith.constant 0 : index
    %43 = vector.load %arg4[%c0_13, %c0_14] : memref<8x128xf32, #tpu.memory_space<vmem>>, vector<8x128xf32>
    tpu.vector_store %arg4[%c0_13, %c0_14], %42 {strides = array<i32>} : memref<8x128xf32, #tpu.memory_space<vmem>>, vector<8x128xf32>,
    %c0_15 = arith.constant 0 : index
    %c0_16 = arith.constant 0 : index
    %44 = vector.load %arg5[%c0_15, %c0_16] : memref<8x128xf32, #tpu.memory_space<vmem>>, vector<8x128xf32>
    %45 = vector.shape_cast %38 : vector<8x128xf32> to vector<1x8x128xf32>
    %cst_17 = arith.constant dense<0.000000e+00> : vector<8x128xf32>
    %46 = vector.multi_reduction <add>, %45, %cst_17 [0] : vector<1x8x128xf32> to vector<8x128xf32>
    %47 = arith.addf %44, %46 : vector<8x128xf32>
    %c0_18 = arith.constant 0 : index
    %c0_19 = arith.constant 0 : index
    %48 = vector.load %arg5[%c0_18, %c0_19] : memref<8x128xf32, #tpu.memory_space<vmem>>, vector<8x128xf32>
    tpu.vector_store %arg5[%c0_18, %c0_19], %47 {strides = array<i32>} : memref<8x128xf32, #tpu.memory_space<vmem>>, vector<8x128xf32>,
    return
  }
  func.func @transform_0(%arg0: i32, %arg1: i32) -> (i32, i32) {
    %c1_i32 = arith.constant 1 : i32
    %0 = arith.muli %arg0, %c1_i32 : i32
    %1 = arith.addi %0, %arg1 : i32
    %c0_i32 = arith.constant 0 : i32
    %2 = arith.minsi %1, %c0_i32 : i32
    %c0_i32_0 = arith.constant 0 : i32
    %c0_i32_1 = arith.constant 0 : i32
    return %2, %c0_i32_0 : i32, i32
  }
  func.func @transform_1(%arg0: i32, %arg1: i32) -> (i32, i32) {
    %c1_i32 = arith.constant 1 : i32
    %0 = arith.muli %arg0, %c1_i32 : i32
    %1 = arith.addi %0, %arg1 : i32
    %c0_i32 = arith.constant 0 : i32
    %2 = arith.minsi %1, %c0_i32 : i32
    %c0_i32_0 = arith.constant 0 : i32
    %c0_i32_1 = arith.constant 0 : i32
    return %2, %c0_i32_0 : i32, i32
  }
  func.func @transform_2(%arg0: i32, %arg1: i32) -> (i32, i32) {
    %c0_i32 = arith.constant 0 : i32
    %c0_i32_0 = arith.constant 0 : i32
    return %arg0, %c0_i32 : i32, i32
  }
  func.func @transform_3(%arg0: i32, %arg1: i32) -> (i32, i32) {
    %c0_i32 = arith.constant 0 : i32
    %c0_i32_0 = arith.constant 0 : i32
    return %arg0, %c0_i32 : i32, i32
  }
}

</mosaic_0001>

<llo_original>
// kernel: tpu_custom_call.1
$region0: #{tpu_custom_call.1}
  #allocation0 [shape = 'u32[]', space=smem, size = 0x4, offset = 0x4, fixed_abs, tag = 'smem constant byte address 0x4 - core index']
  #allocation1 [shape = 'u32[72,128]{1,0:T(1,128)}', space=vmem, size = 0x9000, scoped, tag = 'internal scratch']
  %s0 = inlined_call_operand.hbm [shape: f32[3,128], index: 0, kind: input, shape index: {}]
  %s1 = inlined_call_operand.hbm [shape: f32[3,128], index: 1, kind: input, shape index: {}]
  %s2 = inlined_call_operand.hbm [shape: f32[8,128], index: 2, kind: output, shape index: {0}]
  %s3 = inlined_call_operand.hbm [shape: f32[8,128], index: 3, kind: output, shape index: {1}]
  %4 = xla_tuple %s2, %s3
  %s5 = sld [smem:[#allocation0]]
  $region38: #{tpu_custom_call.1} parent=0
    _
  %s7 = ssub.s32 1, %s5
  %s8 = scalar_select 0, %s7, %s5
  $region1: #{tpu_custom_call.1} parent=0
    #allocation2 [shape = 'u8[4096]{0}', space=vmem, size = 0x1000, scoped, tag = 'input window, operand 0, single buffered']
    #allocation3 [shape = 's32[1]{0}', space=sflag, size = 0x4, scoped, tag = 'scoped memory for tpu_custom_call.1']
    #allocation4 [shape = 's32[1]{0}', space=sflag, size = 0x4, scoped, tag = 'scoped memory for tpu_custom_call.1']
    #allocation5 [shape = 'u8[4096]{0}', space=vmem, size = 0x1000, scoped, tag = 'input window, operand 1, single buffered']
    #allocation6 [shape = 's32[1]{0}', space=sflag, size = 0x4, scoped, tag = 'scoped memory for tpu_custom_call.1']
    #allocation7 [shape = 'u8[4096]{0}', space=vmem, size = 0x1000, scoped, tag = 'output window, operand 0, single buffered']
    #allocation8 [shape = 'u8[4096]{0}', space=vmem, size = 0x1000, scoped, tag = 'output window, operand 1, single buffered']
    #allocation9 [shape = 's32[1]{0}', space=sflag, size = 0x4, scoped, tag = 'scoped memory for tpu_custom_call.1']
    %9 = vsyncpa [#allocation3], 0
    %10 = vsyncpa [#allocation6], 0
    %11 = vsyncpa [#allocation4], 0
    %12 = vsyncpa [#allocation9], 0
    // Predicated region
    $region2: #{tpu_custom_call.1} parent=1 // pred_check
      _
    $region3: #{tpu_custom_call.1} parent=1 // pred_check_branch
      %14 = sbr.rel (0) target = $region5
    $region4: #{tpu_custom_call.1} parent=1 // pred_region
      %s15 = sadd.s32 0, 0
      %p16 = scmp.lt.s32.totalorder %s15, 0
      %s17 = scalar_select %p16, %s15, 0
      %s18 = smul.u32 2, %s17
      %s19 = ssub.s32 1, %s18
      %s20 = smul.u32 4, %s19
      %s21 = ssub.s32 8, %s20
      %s22 = sshll.u32 %s21, 4
      %23 = vsyncadd [#allocation3], %s22
      %p24 = scmp.ne.s32.totalorder 0, %s20
      %s25 = smul.addr %s18, 4
      %s26 = scalar_lea.hbm %s0, %s25
      %s27 = smul.u32 4, %s19
      %s28 = sshll.u32 %s26, 4
      %s29 = int_to_ptr.hbm [resolvable:$true] %s28
      %s30 = sshll.u32 [#allocation2], 4
      %s31 = int_to_ptr.vmem [resolvable:$true] %s30
      %s32 = sshll.u32 %s27, 4
      %36 = dma.hbm_to_vmem [thread:$0]  (%p24), %s29, %s32, %s31, [#allocation3], 64, 64, 4
    $region5: #{tpu_custom_call.1} parent=1 // pred_fallthru
      _
    // Predicated region
    $region6: #{tpu_custom_call.1} parent=1 // pred_check
      _
    $region7: #{tpu_custom_call.1} parent=1 // pred_check_branch
      %38 = sbr.rel (0) target = $region9
    $region8: #{tpu_custom_call.1} parent=1 // pred_region
      %s39 = sadd.s32 0, 0
      %p40 = scmp.lt.s32.totalorder %s39, 0
      %s41 = scalar_select %p40, %s39, 0
      %s42 = smul.u32 2, %s41
      %s43 = ssub.s32 1, %s42
      %s44 = smul.u32 4, %s43
      %s45 = ssub.s32 8, %s44
      %s46 = sshll.u32 %s45, 4
      %47 = vsyncadd [#allocation6], %s46
      %p48 = scmp.ne.s32.totalorder 0, %s44
      %s49 = smul.addr %s42, 4
      %s50 = scalar_lea.hbm %s1, %s49
      %s51 = smul.u32 4, %s43
      %s52 = sshll.u32 %s50, 4
      %s53 = int_to_ptr.hbm [resolvable:$true] %s52
      %s54 = sshll.u32 [#allocation5], 4
      %s55 = int_to_ptr.vmem [resolvable:$true] %s54
      %s56 = sshll.u32 %s51, 4
      %60 = dma.hbm_to_vmem [thread:$0]  (%p48), %s53, %s56, %s55, [#allocation6], 64, 64, 4
    $region9: #{tpu_custom_call.1} parent=1 // pred_fallthru
      _
    // Predicated region
    $region10: #{tpu_custom_call.1} parent=1 // pred_check
      _
    $region11: #{tpu_custom_call.1} parent=1 // pred_check_branch
      %62 = sbr.rel (0) target = $region13
    $region12: #{tpu_custom_call.1} parent=1 // pred_region
      %64 = dma.done [#allocation3], 128
    $region13: #{tpu_custom_call.1} parent=1 // pred_fallthru
      _
    // Predicated region
    $region14: #{tpu_custom_call.1} parent=1 // pred_check
      _
    $region15: #{tpu_custom_call.1} parent=1 // pred_check_branch
      %66 = sbr.rel (0) target = $region17
    $region16: #{tpu_custom_call.1} parent=1 // pred_region
      %68 = dma.done [#allocation6], 128
    $region17: #{tpu_custom_call.1} parent=1 // pred_fallthru
      _
    %s69 = sadd.s32 0, 0
    %p70 = scmp.lt.s32.totalorder %s69, 0
    %s71 = scalar_select %p70, %s69, 0
    %s72 = smul.u32 2, %s71
    %s73 = ssub.s32 1, %s72
    %s74 = smul.u32 4, %s73
    %s75 = sadd.s32 0, 0
    %p76 = scmp.lt.s32.totalorder %s75, 0
    %s77 = scalar_select %p76, %s75, 0
    %s78 = smul.u32 2, %s77
    %s79 = ssub.s32 1, %s78
    %s80 = smul.u32 4, %s79
    %p81 = scmp.eq.s32.totalorder 0, 0
    // Predicated region
    $region18: #{tpu_custom_call.1} parent=1 // pred_check
      %p82 = pneg %p81
    $region19: #{tpu_custom_call.1} parent=1 // pred_check_branch
      %84 = sbr.rel (%p82) target = $region21
    $region20: #{tpu_custom_call.1} parent=1 // pred_region
      %85 = vst [vmem:[#allocation7] sm:$0xff] 0.0
      %86 = vst [vmem:[#allocation8] sm:$0xff] 0.0
    $region21: #{tpu_custom_call.1} parent=1 // pred_fallthru
      _
    %v87 = vld [vmem:[#allocation2] sm:$0xff]
    %v88 = vld [vmem:[#allocation5] sm:$0xff]
    %v89 = vlaneseq
    %v90 = vshrl.u32 %v89, 7
    %v91 = vlaneseq
    %v92 = vand.u32 %v91, 127
    %s93 = sadd.s32 0, 0
    %s94 = smul.u32 %s93, 8
    %v95 = vstv %s94
    %v96 = vadd.s32 %v95, %v90
    %v97 = vmul.u32 %v96, 128
    %v98 = vadd.s32 %v97, %v92
    %vm99 = vcmp.lt.s32.totalorder %v98, 300
    %vm100 = vcmp.ge.f32.partialorder %v88, 0.0
    %vm101 = vmand %vm99, %vm100
    %v102 = vlog2.pop %v87
    %v103 = vmul.f32 %v102, 0.6931472
    %v104 = vmax.f32 %v103, -100.0
    %v105 = vsub.f32 1.0, %v87
    %v106 = vlog2.pop %v105
    %v107 = vmul.f32 %v106, 0.6931472
    %v108 = vmax.f32 %v107, -100.0
    %v109 = vmul.f32 %v88, %v104
    %v110 = vsub.f32 1.0, %v88
    %v111 = vmul.f32 %v110, %v108
    %v112 = vadd.f32 %v109, %v111
    %v113 = vsub.f32 0.0, %v112
    %v114 = vsel %vm101, %v113, 0.0
    %v115 = vsel %vm101, 1, 0
    %v116 = vcvt.s32.f32 %v115
    %v117 = vld [vmem:[#allocation7] sm:$0xff]
    %v118 = vadd.f32 %v114, 0.0
    %v119 = vadd.f32 %v117, %v118
    %120 = vst [vmem:[#allocation7] sm:$0xff] %v119
    %v121 = vld [vmem:[#allocation8] sm:$0xff]
    %v122 = vadd.f32 %v116, 0.0
    %v123 = vadd.f32 %v121, %v122
    %124 = vst [vmem:[#allocation8] sm:$0xff] %v123
    // Predicated region
    $region22: #{tpu_custom_call.1} parent=1 // pred_check
      _
    $region23: #{tpu_custom_call.1} parent=1 // pred_check_branch
      %126 = sbr.rel (0) target = $region25
    $region24: #{tpu_custom_call.1} parent=1 // pred_region
      %128 = vsyncadd [#allocation4], 0
      %s130 = sshll.u32 [#allocation7], 4
      %s131 = int_to_ptr.vmem [resolvable:$true] %s130
      %s132 = sshll.u32 %s2, 4
      %s133 = int_to_ptr.hbm [resolvable:$true] %s132
      %135 = dma.vmem_to_hbm [thread:$0]  %s131, 128, %s133, [#allocation4]
    $region25: #{tpu_custom_call.1} parent=1 // pred_fallthru
      _
    // Predicated region
    $region26: #{tpu_custom_call.1} parent=1 // pred_check
      _
    $region27: #{tpu_custom_call.1} parent=1 // pred_check_branch
      %137 = sbr.rel (0) target = $region29
    $region28: #{tpu_custom_call.1} parent=1 // pred_region
      %139 = vsyncadd [#allocation9], 0
      %s141 = sshll.u32 [#allocation8], 4
      %s142 = int_to_ptr.vmem [resolvable:$true] %s141
      %s143 = sshll.u32 %s3, 4
      %s144 = int_to_ptr.hbm [resolvable:$true] %s143
      %146 = dma.vmem_to_hbm [thread:$0]  %s142, 128, %s144, [#allocation9]
    $region29: #{tpu_custom_call.1} parent=1 // pred_fallthru
      _
    // Predicated region
    $region30: #{tpu_custom_call.1} parent=1 // pred_check
      _
    $region31: #{tpu_custom_call.1} parent=1 // pred_check_branch
      %148 = sbr.rel (0) target = $region33
    $region32: #{tpu_custom_call.1} parent=1 // pred_region
      %150 = dma.done [#allocation4], 128
    $region33: #{tpu_custom_call.1} parent=1 // pred_fallthru
      _
    // Predicated region
    $region34: #{tpu_custom_call.1} parent=1 // pred_check
      _
    $region35: #{tpu_custom_call.1} parent=1 // pred_check_branch
      %152 = sbr.rel (0) target = $region37
    $region36: #{tpu_custom_call.1} parent=1 // pred_region
      %154 = dma.done [#allocation9], 128
    $region37: #{tpu_custom_call.1} parent=1 // pred_fallthru
      _
    %155 = vsyncpa [#allocation3], 1
    %156 = vsyncpa [#allocation6], 1
    %157 = vsyncpa [#allocation4], 1
    %158 = vsyncpa [#allocation9], 1

</llo_original>
